<compile_context>
chip_gen: v5e
topology: v5e:2x2
jax: 0.10.0
libtpu: 0.0.40
codegen_flags: <defaults>
</compile_context>

<pallas_src>
import jax
import jax.numpy as jnp
from jax.experimental import pallas as pl
from jax.experimental.pallas import tpu as pltpu

INV_SQRT2 = 0.7071067811865476


def mlp_kernel(x_ref, w1_ref, b1_ref, w2_ref, b2_ref, o_ref, acc_ref):
    """One (tm, c_in) row tile x one hidden chunk: fc1 + GELU + partial fc2."""
    k = pl.program_id(1)

    @pl.when(k == 0)
    def _():
        acc_ref[...] = jnp.zeros_like(acc_ref)

    # fc1 chunk: native-dtype operands, f32 accumulation on the MXU.
    h = jnp.dot(x_ref[...], w1_ref[...], preferred_element_type=jnp.float32)
    h = h + b1_ref[...].astype(jnp.float32)

    # GELU (exact erf form, matching the PyTorch GELU module) — f32 math.
    h = h * (0.5 * (1.0 + jax.lax.erf(h * INV_SQRT2)))

    # dropout(p=0.2): identity in inference mode (deterministic forward).

    # fc2 partial product for this hidden chunk; accumulate in f32 scratch.
    acc_ref[...] += jnp.dot(
        h.astype(w2_ref.dtype), w2_ref[...], preferred_element_type=jnp.float32
    )

    @pl.when(k == pl.num_programs(1) - 1)
    def _():
        o_ref[...] = (acc_ref[...] + b2_ref[...].astype(jnp.float32)).astype(o_ref.dtype)


def _pick_row_tile(m_rows):
    """Prefer 256-512 row tiles; shrink until there are >= 4 grid programs."""
    tm = 512
    while tm > 8 and pl.cdiv(m_rows, tm) < 4:
        tm //= 2
    return max(8, tm)


def _pick_hidden_tile(hidden, cap=512):
    """Largest hidden chunk <= cap (full hidden if it already fits)."""
    return hidden if hidden <= cap else cap


def mlp_forward(x, params):
    """MLP.forward for x of shape (..., in_features)."""
    w1, b1, w2, b2 = params["w1"], params["b1"], params["w2"], params["b2"]
    c_in, hidden = w1.shape
    c_out = w2.shape[1]

    orig_lead = x.shape[:-1]
    x2 = x.reshape(-1, c_in)  # fold batch/seq into rows (no activation padding)
    m = x2.shape[0]

    tm = _pick_row_tile(m)
    th = _pick_hidden_tile(hidden)

    # Pad weights (not activations) along hidden if needed: padded w2 rows are
    # zero so their contribution to the accumulator is exactly zero.
    h_pad = pl.cdiv(hidden, th) * th
    if h_pad != hidden:
        w1 = jnp.pad(w1, ((0, 0), (0, h_pad - hidden)))
        b1 = jnp.pad(b1, ((0, 0), (0, h_pad - hidden)))
        w2 = jnp.pad(w2, ((0, h_pad - hidden), (0, 0)))

    grid = (pl.cdiv(m, tm), h_pad // th)

    isz = x2.dtype.itemsize
    wsz = w1.dtype.itemsize
    osz = x2.dtype.itemsize
    # Rough per-call VMEM plan (double-buffered blocks + f32 accumulator).
    vmem_est = (
        2 * tm * c_in * isz
        + 2 * c_in * th * wsz
        + 2 * th * 4
        + 2 * th * c_out * wsz
        + 2 * c_out * 4
        + 2 * tm * c_out * osz
        + tm * c_out * 4
    )
    vmem_limit = int(min(max(2 * vmem_est + (4 << 20), 32 << 20), 56 << 20))

    cost = pl.CostEstimate(
        flops=2 * m * (c_in * hidden + hidden * c_out),
        transcendentals=m * hidden,
        bytes_accessed=int(
            m * c_in * isz
            + c_in * hidden * wsz
            + hidden * c_out * wsz
            + hidden * 4
            + c_out * 4
            + m * c_out * osz
        ),
    )

    out = pl.pallas_call(
        mlp_kernel,
        out_shape=jax.ShapeDtypeStruct((m, c_out), x.dtype),
        grid=grid,
        in_specs=[
            pl.BlockSpec((tm, c_in), lambda i, k: (i, 0)),       # x row tile
            pl.BlockSpec((c_in, th), lambda i, k: (0, k)),       # w1 hidden chunk
            pl.BlockSpec((1, th), lambda i, k: (0, k)),          # b1 hidden chunk
            pl.BlockSpec((th, c_out), lambda i, k: (k, 0)),      # w2 hidden chunk
            pl.BlockSpec((1, c_out), lambda i, k: (0, 0)),       # b2 (resident)
        ],
        out_specs=pl.BlockSpec((tm, c_out), lambda i, k: (i, 0)),
        scratch_shapes=[pltpu.VMEM((tm, c_out), jnp.float32)],
        compiler_params=pltpu.CompilerParams(
            dimension_semantics=("parallel", "arbitrary"),
            vmem_limit_bytes=vmem_limit,
        ),
        cost_estimate=cost,
    )(x2, w1, b1, w2, b2)

    return out.reshape(*orig_lead, c_out)


# ------------------------- parameter init & reference -------------------------
def init_mlp_params(key, in_features, hidden_features=None, out_features=None,
                    weight_dtype=jnp.bfloat16):
    hidden_features = hidden_features or in_features
    out_features = out_features or in_features
    k1, k2, k3, k4 = jax.random.split(key, 4)
    w1 = jax.random.normal(k1, (in_features, hidden_features), jnp.float32)
    w1 = w1 / jnp.sqrt(in_features)
    w2 = jax.random.normal(k3, (hidden_features, out_features), jnp.float32)
    w2 = w2 / jnp.sqrt(hidden_features)
    return {
        "w1": w1.astype(weight_dtype),
        "b1": 0.01 * jax.random.normal(k2, (1, hidden_features), jnp.float32),
        "w2": w2.astype(weight_dtype),
        "b2": 0.01 * jax.random.normal(k4, (1, out_features), jnp.float32),
    }


def ref_mlp(x, p):
    """Pure-JAX reference using the same dtype quantization steps as the kernel."""
    xf = x.astype(jnp.float32)
    w1 = p["w1"].astype(jnp.float32)
    w2 = p["w2"].astype(jnp.float32)
    h = xf @ w1 + p["b1"]
    h = h * 0.5 * (1.0 + jax.lax.erf(h * INV_SQRT2))
    # dropout: identity at inference
    h = h.astype(p["w2"].dtype).astype(jnp.float32)
    return h @ w2 + p["b2"]


if __name__ == "__main__":
    # Small but lane-dense shapes (features are multiples of 128).
    B, N, DIM = 2, 16, 128
    HIDDEN = 2 * DIM

    root = jax.random.PRNGKey(0)
    kx, kp = jax.random.split(root, 2)
    x = jax.random.normal(kx, (B, N, DIM), jnp.float32).astype(jnp.bfloat16)
    params = init_mlp_params(kp, DIM, HIDDEN, DIM, weight_dtype=jnp.bfloat16)

    out = mlp_forward(x, params)
    out = jax.block_until_ready(out)

    ref = ref_mlp(x, params)
    assert out.shape == (B, N, DIM)
    assert jnp.allclose(out.astype(jnp.float32), ref, atol=1e-2, rtol=1e-2), \
        "mismatch vs JAX reference"

    print("KERNEL_OK")
</pallas_src>

<mosaic_0001>
module attributes {stable_mosaic.version = 11 : i64} {
  func.func @mlp_kernel(%arg0: i32, %arg1: i32, %arg2: memref<8x128xbf16, #tpu.memory_space<vmem>>, %arg3: memref<128x256xbf16, #tpu.memory_space<vmem>>, %arg4: memref<1x256xf32, #tpu.memory_space<vmem>>, %arg5: memref<256x128xbf16, #tpu.memory_space<vmem>>, %arg6: memref<1x128xf32, #tpu.memory_space<vmem>>, %arg7: memref<8x128xbf16, #tpu.memory_space<vmem>>, %arg8: memref<8x128xf32, #tpu.memory_space<vmem>>) attributes {dimension_semantics = [#tpu.dimension_semantics<parallel>, #tpu.dimension_semantics<arbitrary>], iteration_bounds = array<i64: 4, 1>, scalar_prefetch = 0 : i64, scratch_operands = 1 : i64, tpu.core_type = #tpu.core_type<tc>, window_params = [{transform_indices = @transform_0, window_bounds = array<i64: 8, 128>}, {transform_indices = @transform_1, window_bounds = array<i64: 128, 256>}, {transform_indices = @transform_2, window_bounds = array<i64: 1, 256>}, {transform_indices = @transform_3, window_bounds = array<i64: 256, 128>}, {pipeline_mode = #tpu.pipeline_mode<synchronous>, transform_indices = @transform_4, window_bounds = array<i64: 1, 128>}, {transform_indices = @transform_5, window_bounds = array<i64: 8, 128>}]} {
    %c0_i32 = arith.constant 0 : i32
    %0 = arith.cmpi eq, %arg1, %c0_i32 : i32
    %1 = arith.extui %0 : i1 to i32
    %c0_i32_0 = arith.constant 0 : i32
    %2 = arith.cmpi ne, %1, %c0_i32_0 : i32
    scf.if %2 {
      %cst_18 = arith.constant 0.000000e+00 : f32
      %26 = vector.broadcast %cst_18 : f32 to vector<8x128xf32>
      %c0_19 = arith.constant 0 : index
      %c0_20 = arith.constant 0 : index
      %27 = vector.load %arg8[%c0_19, %c0_20] : memref<8x128xf32, #tpu.memory_space<vmem>>, vector<8x128xf32>
      tpu.vector_store %arg8[%c0_19, %c0_20], %26 {strides = array<i32>} : memref<8x128xf32, #tpu.memory_space<vmem>>, vector<8x128xf32>,
    } else {
    }
    %c0 = arith.constant 0 : index
    %c0_1 = arith.constant 0 : index
    %3 = vector.load %arg2[%c0, %c0_1] : memref<8x128xbf16, #tpu.memory_space<vmem>>, vector<8x128xbf16>
    %c0_2 = arith.constant 0 : index
    %c0_3 = arith.constant 0 : index
    %4 = vector.load %arg3[%c0_2, %c0_3] : memref<128x256xbf16, #tpu.memory_space<vmem>>, vector<128x256xbf16>
    %cst = arith.constant dense<0.000000e+00> : vector<8x256xf32>
    %5 = tpu.matmul %3, %4, %cst {dimension_numbers = #tpu.dot_dimension_numbers<[1], [0], [0], [1], [0, 0, 1, 1], [], []>} : vector<8x128xbf16>, vector<128x256xbf16>, vector<8x256xf32> -> vector<8x256xf32>
    %c0_4 = arith.constant 0 : index
    %c0_5 = arith.constant 0 : index
    %6 = vector.load %arg4[%c0_4, %c0_5] : memref<1x256xf32, #tpu.memory_space<vmem>>, vector<1x256xf32>
    %7 = vector.broadcast %6 : vector<1x256xf32> to vector<8x256xf32>
    %8 = arith.addf %5, %7 : vector<8x256xf32>
    %cst_6 = arith.constant 0.707106769 : f32
    %9 = vector.broadcast %cst_6 : f32 to vector<8x256xf32>
    %10 = arith.mulf %8, %9 : vector<8x256xf32>
    %11 = math.erf %10 : vector<8x256xf32>
    %cst_7 = arith.constant 1.000000e+00 : f32
    %12 = vector.broadcast %cst_7 : f32 to vector<8x256xf32>
    %13 = arith.addf %12, %11 : vector<8x256xf32>
    %cst_8 = arith.constant 5.000000e-01 : f32
    %14 = vector.broadcast %cst_8 : f32 to vector<8x256xf32>
    %15 = arith.mulf %14, %13 : vector<8x256xf32>
    %16 = arith.mulf %8, %15 : vector<8x256xf32>
    %c0_9 = arith.constant 0 : index
    %c0_10 = arith.constant 0 : index
    %17 = vector.load %arg8[%c0_9, %c0_10] : memref<8x128xf32, #tpu.memory_space<vmem>>, vector<8x128xf32>
    %18 = arith.truncf %16 : vector<8x256xf32> to vector<8x256xbf16>
    %c0_11 = arith.constant 0 : index
    %c0_12 = arith.constant 0 : index
    %19 = vector.load %arg5[%c0_11, %c0_12] : memref<256x128xbf16, #tpu.memory_space<vmem>>, vector<256x128xbf16>
    %cst_13 = arith.constant dense<0.000000e+00> : vector<8x128xf32>
    %20 = tpu.matmul %18, %19, %cst_13 {dimension_numbers = #tpu.dot_dimension_numbers<[1], [0], [0], [1], [0, 0, 1, 1], [], []>} : vector<8x256xbf16>, vector<256x128xbf16>, vector<8x128xf32> -> vector<8x128xf32>
    %21 = arith.addf %17, %20 : vector<8x128xf32>
    %c0_14 = arith.constant 0 : index
    %c0_15 = arith.constant 0 : index
    %22 = vector.load %arg8[%c0_14, %c0_15] : memref<8x128xf32, #tpu.memory_space<vmem>>, vector<8x128xf32>
    tpu.vector_store %arg8[%c0_14, %c0_15], %21 {strides = array<i32>} : memref<8x128xf32, #tpu.memory_space<vmem>>, vector<8x128xf32>,
    %c0_i32_16 = arith.constant 0 : i32
    %23 = arith.cmpi eq, %arg1, %c0_i32_16 : i32
    %24 = arith.extui %23 : i1 to i32
    %c0_i32_17 = arith.constant 0 : i32
    %25 = arith.cmpi ne, %24, %c0_i32_17 : i32
    scf.if %25 {
      %c0_18 = arith.constant 0 : index
      %c0_19 = arith.constant 0 : index
      %26 = vector.load %arg8[%c0_18, %c0_19] : memref<8x128xf32, #tpu.memory_space<vmem>>, vector<8x128xf32>
      %c0_20 = arith.constant 0 : index
      %c0_21 = arith.constant 0 : index
      %27 = vector.load %arg6[%c0_20, %c0_21] : memref<1x128xf32, #tpu.memory_space<vmem>>, vector<1x128xf32>
      %28 = vector.broadcast %27 : vector<1x128xf32> to vector<8x128xf32>
      %29 = arith.addf %26, %28 : vector<8x128xf32>
      %30 = arith.truncf %29 : vector<8x128xf32> to vector<8x128xbf16>
      %c0_22 = arith.constant 0 : index
      %c0_23 = arith.constant 0 : index
      %31 = vector.load %arg7[%c0_22, %c0_23] : memref<8x128xbf16, #tpu.memory_space<vmem>>, vector<8x128xbf16>
      tpu.vector_store %arg7[%c0_22, %c0_23], %30 {strides = array<i32>} : memref<8x128xbf16, #tpu.memory_space<vmem>>, vector<8x128xbf16>,
    } else {
    }
    return
  }
  func.func @transform_0(%arg0: i32, %arg1: i32) -> (i32, i32) {
    %c0_i32 = arith.constant 0 : i32
    %c0_i32_0 = arith.constant 0 : i32
    return %arg0, %c0_i32 : i32, i32
  }
  func.func @transform_1(%arg0: i32, %arg1: i32) -> (i32, i32) {
    %c0_i32 = arith.constant 0 : i32
    %c0_i32_0 = arith.constant 0 : i32
    return %c0_i32, %arg1 : i32, i32
  }
  func.func @transform_2(%arg0: i32, %arg1: i32) -> (i32, i32) {
    %c0_i32 = arith.constant 0 : i32
    %c0_i32_0 = arith.constant 0 : i32
    return %c0_i32, %arg1 : i32, i32
  }
  func.func @transform_3(%arg0: i32, %arg1: i32) -> (i32, i32) {
    %c0_i32 = arith.constant 0 : i32
    %c0_i32_0 = arith.constant 0 : i32
    return %arg1, %c0_i32 : i32, i32
  }
  func.func @transform_4(%arg0: i32, %arg1: i32) -> (i32, i32) {
    %c0_i32 = arith.constant 0 : i32
    %c0_i32_0 = arith.constant 0 : i32
    %c0_i32_1 = arith.constant 0 : i32
    return %c0_i32, %c0_i32_0 : i32, i32
  }
  func.func @transform_5(%arg0: i32, %arg1: i32) -> (i32, i32) {
    %c0_i32 = arith.constant 0 : i32
    %c0_i32_0 = arith.constant 0 : i32
    return %arg0, %c0_i32 : i32, i32
  }
}

</mosaic_0001>

<llo_original>
// kernel: tpu_custom_call.1
$region0: #{tpu_custom_call.1}
  #allocation0 [shape = 'u32[]', space=smem, size = 0x4, offset = 0x4, fixed_abs, tag = 'smem constant byte address 0x4 - core index']
  #allocation1 [shape = 'u32[72,128]{1,0:T(1,128)}', space=vmem, size = 0x9000, scoped, tag = 'internal scratch']
  #allocation2 [shape = 'f32[8,128]{1,0:T(8,128)}', space=vmem, size = 0x1000, scoped, tag = 'scratch operand']
  %s0 = inlined_call_operand.hbm [shape: bf16[32,128], index: 0, kind: input, shape index: {}]
  %s1 = inlined_call_operand.hbm [shape: bf16[128,256], index: 1, kind: input, shape index: {}]
  %s2 = inlined_call_operand.hbm [shape: f32[1,256], index: 2, kind: input, shape index: {}]
  %s3 = inlined_call_operand.hbm [shape: bf16[256,128], index: 3, kind: input, shape index: {}]
  %s4 = inlined_call_operand.vmem [shape: f32[1,128], index: 4, kind: input, shape index: {}]
  %s5 = inlined_call_operand.hbm [shape: bf16[32,128], index: 5, kind: output, shape index: {}]
  %s6 = sld [smem:[#allocation0]]
  $region77: #{tpu_custom_call.1} parent=0
    _
  %s8 = ssub.s32 1, %s6
  %s9 = scalar_select 0, %s8, %s6
  $region1: #{tpu_custom_call.1} parent=0
    #allocation3 [shape = 'u8[4096]{0}', space=vmem, size = 0x1000, scoped, tag = 'input window, operand 0']
    #allocation4 [shape = 's32[2]{0}', space=sflag, size = 0x8, scoped, tag = 'scoped memory for tpu_custom_call.1']
    #allocation5 [shape = 's32[2]{0}', space=sflag, size = 0x8, scoped, tag = 'scoped memory for tpu_custom_call.1']
    #allocation6 [shape = 'u8[65536]{0}', space=vmem, size = 0x10000, scoped, tag = 'input window, operand 1, single buffered']
    #allocation7 [shape = 's32[1]{0}', space=sflag, size = 0x4, scoped, tag = 'scoped memory for tpu_custom_call.1']
    #allocation8 [shape = 'u8[1024]{0}', space=vmem, size = 0x400, scoped, tag = 'input window, operand 2, single buffered']
    #allocation9 [shape = 'u8[65536]{0}', space=vmem, size = 0x10000, scoped, tag = 'input window, operand 3, single buffered']
    #allocation10 [shape = 's32[1]{0}', space=sflag, size = 0x4, scoped, tag = 'scoped memory for tpu_custom_call.1']
    #allocation11 [shape = 'u8[4096]{0}', space=vmem, size = 0x1000, scoped, tag = 'output window, operand 0']
    %10 = vsyncpa [#allocation4], 0
    %s11 = scalar_lea.sflag [#allocation4], 1
    %12 = vsyncpa %s11, 0
    %13 = vsyncpa [#allocation7], 0
    %14 = vsyncpa [#allocation10], 0
    %15 = vsyncpa [#allocation5], 0
    %s16 = scalar_lea.sflag [#allocation5], 1
    %17 = vsyncpa %s16, 0
    loop: start=0, step=1, limit=6
    $region2: #{tpu_custom_call.1} parent=1 // loop_pre_header
      _
    $region3: #{tpu_custom_call.1} parent=1 // loop_header
      %s19 = sphi 0, %s23
      %p20 = scmp.ge.s32.totalorder %s19, 6
      %s26 = sphi 0, %s38
      %s27 = sphi 0, %s34
      %s28 = sphi 0, %s26
      %s29 = sphi 0, %s27
      %s30 = sphi 0, %s28
      %s31 = sphi 0, %s29
      %s41 = sphi 0, %s43
      %s44 = sphi 0, %s41
      %s45 = sphi 0, %s44
      %s61 = sphi 0, %s45
      %s67 = sphi 0, %s69
      %s70 = sphi 0, %s67
      %s71 = sphi 0, %s70
      %s87 = sphi 0, %s71
      %s93 = sphi 0, %s95
      %s96 = sphi 0, %s93
      %s97 = sphi 0, %s96
      %s113 = sphi 0, %s97
      %s119 = sphi 0, %s121
      %s122 = sphi 0, %s119
      %s123 = sphi 0, %s122
      %s139 = sphi 0, %s123
      %s143 = sphi 0, %s143
      %s145 = sphi 0, %s143
      %s146 = sphi 0, %s145
      %s160 = sphi 0, %s146
      %s166 = sphi 0, %s168
      %s169 = sphi 0, %s166
      %s170 = sphi 0, %s169
      %s186 = sphi 0, %s170
    $region4: #{tpu_custom_call.1} parent=1 // loop_header_branch
      %22 = sbr.rel (%p20) target = $region8
    $region5: #{tpu_custom_call.1} parent=1 // loop_body
      %s24 = ssub.s32 %s19, 1
      %s25 = ssub.s32 %s19, 2
      %s32 = sadd.s32 1, %s27
      %p33 = scmp.ge.s32.totalorder %s32, 1
      %s34 = scalar_select %p33, 0, %s32
      %s35 = sadd.s32 1, %s26
      %s36 = scalar_select %p33, %s35, %s26
      %p37 = scmp.ge.s32.totalorder %s36, 4
      %s38 = scalar_select %p37, 0, %s36
      %s39 = ssub.s32 %s26, %s38
      %p40 = scmp.eq.s32.totalorder %s39, 0
      %s42 = sadd.s32 %s41, 1
      %s43 = scalar_select %p40, %s41, %s42
      %p46 = pneg %p40
      %p47 = scmp.eq.s32.totalorder %s19, 3
      %p48 = por %p46, %p47
      %p49 = scmp.ne.s32.totalorder %s41, %s44
      %p50 = scmp.eq.s32.totalorder %s19, 0
      %p51 = por %p49, %p50
      %p52 = scmp.ne.s32.totalorder %s41, %s44
      %p53 = scmp.eq.s32.totalorder %s24, 3
      %p54 = por %p52, %p53
      %p55 = scmp.ne.s32.totalorder %s44, %s45
      %p56 = scmp.eq.s32.totalorder %s24, 0
      %p57 = por %p55, %p56
      %p58 = scmp.ne.s32.totalorder %s44, %s45
      %p59 = scmp.eq.s32.totalorder %s25, 3
      %p60 = por %p58, %p59
      %p62 = scmp.ne.s32.totalorder %s45, %s61
      %p63 = scmp.eq.s32.totalorder %s25, 0
      %p64 = por %p62, %p63
      %s65 = ssub.s32 %s27, %s34
      %p66 = scmp.eq.s32.totalorder %s65, 0
      %s68 = sadd.s32 %s67, 1
      %s69 = scalar_select %p66, %s67, %s68
      %p72 = pneg %p66
      %p73 = scmp.eq.s32.totalorder %s19, 3
      %p74 = por %p72, %p73
      %p75 = scmp.ne.s32.totalorder %s67, %s70
      %p76 = scmp.eq.s32.totalorder %s19, 0
      %p77 = por %p75, %p76
      %p78 = scmp.ne.s32.totalorder %s67, %s70
      %p79 = scmp.eq.s32.totalorder %s24, 3
      %p80 = por %p78, %p79
      %p81 = scmp.ne.s32.totalorder %s70, %s71
      %p82 = scmp.eq.s32.totalorder %s24, 0
      %p83 = por %p81, %p82
      %p84 = scmp.ne.s32.totalorder %s70, %s71
      %p85 = scmp.eq.s32.totalorder %s25, 3
      %p86 = por %p84, %p85
      %p88 = scmp.ne.s32.totalorder %s71, %s87
      %p89 = scmp.eq.s32.totalorder %s25, 0
      %p90 = por %p88, %p89
      %s91 = ssub.s32 %s27, %s34
      %p92 = scmp.eq.s32.totalorder %s91, 0
      %s94 = sadd.s32 %s93, 1
      %s95 = scalar_select %p92, %s93, %s94
      %p98 = pneg %p92
      %p99 = scmp.eq.s32.totalorder %s19, 3
      %p100 = por %p98, %p99
      %p101 = scmp.ne.s32.totalorder %s93, %s96
      %p102 = scmp.eq.s32.totalorder %s19, 0
      %p103 = por %p101, %p102
      %p104 = scmp.ne.s32.totalorder %s93, %s96
      %p105 = scmp.eq.s32.totalorder %s24, 3
      %p106 = por %p104, %p105
      %p107 = scmp.ne.s32.totalorder %s96, %s97
      %p108 = scmp.eq.s32.totalorder %s24, 0
      %p109 = por %p107, %p108
      %p110 = scmp.ne.s32.totalorder %s96, %s97
      %p111 = scmp.eq.s32.totalorder %s25, 3
      %p112 = por %p110, %p111
      %p114 = scmp.ne.s32.totalorder %s97, %s113
      %p115 = scmp.eq.s32.totalorder %s25, 0
      %p116 = por %p114, %p115
      %s117 = ssub.s32 %s27, %s34
      %p118 = scmp.eq.s32.totalorder %s117, 0
      %s120 = sadd.s32 %s119, 1
      %s121 = scalar_select %p118, %s119, %s120
      %p124 = pneg %p118
      %p125 = scmp.eq.s32.totalorder %s19, 3
      %p126 = por %p124, %p125
      %p127 = scmp.ne.s32.totalorder %s119, %s122
      %p128 = scmp.eq.s32.totalorder %s19, 0
      %p129 = por %p127, %p128
      %p130 = scmp.ne.s32.totalorder %s119, %s122
      %p131 = scmp.eq.s32.totalorder %s24, 3
      %p132 = por %p130, %p131
      %p133 = scmp.ne.s32.totalorder %s122, %s123
      %p134 = scmp.eq.s32.totalorder %s24, 0
      %p135 = por %p133, %p134
      %p136 = scmp.ne.s32.totalorder %s122, %s123
      %p137 = scmp.eq.s32.totalorder %s25, 3
      %p138 = por %p136, %p137
      %p140 = scmp.ne.s32.totalorder %s123, %s139
      %p141 = scmp.eq.s32.totalorder %s25, 0
      %p142 = por %p140, %p141
      %s144 = sadd.s32 %s143, 1
      %p147 = scmp.eq.s32.totalorder %s19, 3
      %p148 = scmp.ne.s32.totalorder %s143, %s145
      %p149 = scmp.eq.s32.totalorder %s19, 0
      %p150 = por %p148, %p149
      %p151 = scmp.ne.s32.totalorder %s143, %s145
      %p152 = scmp.eq.s32.totalorder %s24, 3
      %p153 = por %p151, %p152
      %p154 = scmp.ne.s32.totalorder %s145, %s146
      %p155 = scmp.eq.s32.totalorder %s24, 0
      %p156 = por %p154, %p155
      %p157 = scmp.ne.s32.totalorder %s145, %s146
      %p158 = scmp.eq.s32.totalorder %s25, 3
      %p159 = por %p157, %p158
      %p161 = scmp.ne.s32.totalorder %s146, %s160
      %p162 = scmp.eq.s32.totalorder %s25, 0
      %p163 = por %p161, %p162
      %s164 = ssub.s32 %s26, %s38
      %p165 = scmp.eq.s32.totalorder %s164, 0
      %s167 = sadd.s32 %s166, 1
      %s168 = scalar_select %p165, %s166, %s167
      %p171 = pneg %p165
      %p172 = scmp.eq.s32.totalorder %s19, 3
      %p173 = por %p171, %p172
      %p174 = scmp.ne.s32.totalorder %s166, %s169
      %p175 = scmp.eq.s32.totalorder %s19, 0
      %p176 = por %p174, %p175
      %p177 = scmp.ne.s32.totalorder %s166, %s169
      %p178 = scmp.eq.s32.totalorder %s24, 3
      %p179 = por %p177, %p178
      %p180 = scmp.ne.s32.totalorder %s169, %s170
      %p181 = scmp.eq.s32.totalorder %s24, 0
      %p182 = por %p180, %p181
      %p183 = scmp.ne.s32.totalorder %s169, %s170
      %p184 = scmp.eq.s32.totalorder %s25, 3
      %p185 = por %p183, %p184
      %p187 = scmp.ne.s32.totalorder %s170, %s186
      %p188 = scmp.eq.s32.totalorder %s25, 0
      %p189 = por %p187, %p188
      %p190 = scmp.le.s32.totalorder 1, %s19
      %p191 = scmp.lt.s32.totalorder %s19, 5
      %p192 = pnand %p190, %p191
      %p193 = pneg %p192
      // Predicated region
      $region9: #{tpu_custom_call.1} parent=5 // pred_check
        _
      $region10: #{tpu_custom_call.1} parent=5 // pred_check_branch
        %195 = sbr.rel (%p192) target = $region12
      $region11: #{tpu_custom_call.1} parent=5 // pred_region
        %s196 = ssub.s32 %s19, 1
        // Predicated region
        $region13: #{tpu_custom_call.1} parent=11 // pred_check
          %p197 = pneg %p83
        $region14: #{tpu_custom_call.1} parent=11 // pred_check_branch
          %199 = sbr.rel (%p197) target = $region16
        $region15: #{tpu_custom_call.1} parent=11 // pred_region
          %s200 = smul.u32 2, %s29
          %202 = vsyncadd [#allocation7], 0
          %s203 = smul.addr %s200, 4
          %s204 = scalar_lea.hbm %s1, %s203
          %s205 = sshll.u32 %s204, 4
          %s206 = int_to_ptr.hbm [resolvable:$true] %s205
          %s207 = sshll.u32 [#allocation6], 4
          %s208 = int_to_ptr.vmem [resolvable:$true] %s207
          %213 = dma.hbm_to_vmem [thread:$0]  %s206, 2048, %s208, [#allocation7], 128, 128, 8
        $region16: #{tpu_custom_call.1} parent=11 // pred_fallthru
          _
        // Predicated region
        $region17: #{tpu_custom_call.1} parent=11 // pred_check
          %p214 = pneg %p109
        $region18: #{tpu_custom_call.1} parent=11 // pred_check_branch
          %216 = sbr.rel (%p214) target = $region20
        $region19: #{tpu_custom_call.1} parent=11 // pred_region
          %s217 = smul.u32 2, %s29
          %219 = vsyncadd [#allocation7], 0
          %s220 = scalar_lea.hbm %s2, %s217
          %s222 = sshll.u32 %s220, 4
          %s223 = int_to_ptr.hbm [resolvable:$true] %s222
          %s224 = sshll.u32 [#allocation8], 4
          %s225 = int_to_ptr.vmem [resolvable:$true] %s224
          %227 = dma.hbm_to_vmem [thread:$0]  %s223, 32, %s225, [#allocation7]
        $region20: #{tpu_custom_call.1} parent=11 // pred_fallthru
          _
        // Predicated region
        $region21: #{tpu_custom_call.1} parent=11 // pred_check
          %p228 = pneg %p135
        $region22: #{tpu_custom_call.1} parent=11 // pred_check_branch
          %230 = sbr.rel (%p228) target = $region24
        $region23: #{tpu_custom_call.1} parent=11 // pred_region
          %s231 = smul.u32 32, %s29
          %233 = vsyncadd [#allocation10], 0
          %s234 = smul.addr %s231, 4
          %s235 = scalar_lea.hbm %s3, %s234
          %s236 = sshll.u32 %s235, 4
          %s237 = int_to_ptr.hbm [resolvable:$true] %s236
          %s238 = sshll.u32 [#allocation9], 4
          %s239 = int_to_ptr.vmem [resolvable:$true] %s238
          %244 = dma.hbm_to_vmem [thread:$0]  %s237, 2048, %s239, [#allocation10], 64, 64, 4
        $region24: #{tpu_custom_call.1} parent=11 // pred_fallthru
          _
        // Predicated region
        $region25: #{tpu_custom_call.1} parent=11 // pred_check
          %p245 = pneg %p156
        $region26: #{tpu_custom_call.1} parent=11 // pred_check_branch
          %247 = sbr.rel (%p245) target = $region28
        $region27: #{tpu_custom_call.1} parent=11 // pred_region
          _
        $region28: #{tpu_custom_call.1} parent=11 // pred_fallthru
          _
      $region12: #{tpu_custom_call.1} parent=5 // pred_fallthru
        _
      %p248 = scmp.lt.s32.totalorder %s19, 4
      // Predicated region
      $region29: #{tpu_custom_call.1} parent=5 // pred_check
        %p249 = pneg %p248
      $region30: #{tpu_custom_call.1} parent=5 // pred_check_branch
        %251 = sbr.rel (%p249) target = $region32
      $region31: #{tpu_custom_call.1} parent=5 // pred_region
        // Predicated region
        $region33: #{tpu_custom_call.1} parent=31 // pred_check
          %p252 = pneg %p51
        $region34: #{tpu_custom_call.1} parent=31 // pred_check_branch
          %254 = sbr.rel (%p252) target = $region36
        $region35: #{tpu_custom_call.1} parent=31 // pred_region
          %s255 = sand.u32 %s41, 1
          %s256 = scalar_lea.sflag [#allocation4], %s255
          %s257 = sand.u32 %s41, 1
          %s258 = smul.addr %s257, 4
          %s259 = scalar_lea.vmem [#allocation3], %s258
          %261 = vsyncadd %s256, 0
          %s262 = smul.addr %s26, 4
          %s263 = scalar_lea.hbm %s0, %s262
          %s265 = sshll.u32 %s263, 4
          %s266 = int_to_ptr.hbm [resolvable:$true] %s265
          %s267 = sshll.u32 %s259, 4
          %s268 = int_to_ptr.vmem [resolvable:$true] %s267
          %270 = dma.hbm_to_vmem [thread:$0]  %s266, 64, %s268, %s256
        $region36: #{tpu_custom_call.1} parent=31 // pred_fallthru
          _
      $region32: #{tpu_custom_call.1} parent=5 // pred_fallthru
        _
      %p271 = scmp.le.s32.totalorder 1, %s19
      %p272 = scmp.lt.s32.totalorder %s19, 5
      %p273 = pnand %p271, %p272
      %p274 = pneg %p273
      // Predicated region
      $region37: #{tpu_custom_call.1} parent=5 // pred_check
        _
      $region38: #{tpu_custom_call.1} parent=5 // pred_check_branch
        %276 = sbr.rel (%p273) target = $region40
      $region39: #{tpu_custom_call.1} parent=5 // pred_region
        %s277 = ssub.s32 %s19, 1
        %s278 = sand.u32 %s44, 1
        %s279 = scalar_lea.sflag [#allocation4], %s278
        %s280 = sand.u32 %s44, 1
        %s281 = smul.addr %s280, 4
        %s282 = scalar_lea.vmem [#allocation3], %s281
        // Predicated region
        $region41: #{tpu_custom_call.1} parent=39 // pred_check
          %p283 = pneg %p57
        $region42: #{tpu_custom_call.1} parent=39 // pred_check_branch
          %285 = sbr.rel (%p283) target = $region44
        $region43: #{tpu_custom_call.1} parent=39 // pred_region
          %287 = dma.done %s279, 64
        $region44: #{tpu_custom_call.1} parent=39 // pred_fallthru
          _
        // Predicated region
        $region45: #{tpu_custom_call.1} parent=39 // pred_check
          %p288 = pneg %p83
        $region46: #{tpu_custom_call.1} parent=39 // pred_check_branch
          %290 = sbr.rel (%p288) target = $region48
        $region47: #{tpu_custom_call.1} parent=39 // pred_region
          %292 = dma.done [#allocation7], 2048
        $region48: #{tpu_custom_call.1} parent=39 // pred_fallthru
          _
        // Predicated region
        $region49: #{tpu_custom_call.1} parent=39 // pred_check
          %p293 = pneg %p109
        $region50: #{tpu_custom_call.1} parent=39 // pred_check_branch
          %295 = sbr.rel (%p293) target = $region52
        $region51: #{tpu_custom_call.1} parent=39 // pred_region
          %297 = dma.done [#allocation7], 32
        $region52: #{tpu_custom_call.1} parent=39 // pred_fallthru
          _
        // Predicated region
        $region53: #{tpu_custom_call.1} parent=39 // pred_check
          %p298 = pneg %p135
        $region54: #{tpu_custom_call.1} parent=39 // pred_check_branch
          %300 = sbr.rel (%p298) target = $region56
        $region55: #{tpu_custom_call.1} parent=39 // pred_region
          %302 = dma.done [#allocation10], 2048
        $region56: #{tpu_custom_call.1} parent=39 // pred_fallthru
          _
        %s303 = sand.u32 %s44, 1
        %s304 = scalar_lea.sflag [#allocation4], %s303
        %s305 = sand.u32 %s44, 1
        %s306 = smul.addr %s305, 4
        %s307 = scalar_lea.vmem [#allocation3], %s306
        %p308 = pneg %p57
        %p309 = pneg %p54
        %p310 = pneg %p83
        %p311 = pneg %p80
        %p312 = pneg %p109
        %p313 = pneg %p106
        %p314 = pneg %p135
        %p315 = pneg %p132
        %p316 = pneg %p156
        %p317 = pneg %p153
        %p318 = pneg %p182
        %p319 = pneg %p179
        %s320 = sand.u32 %s169, 1
        %s321 = scalar_lea.sflag [#allocation5], %s320
        %s322 = sand.u32 %s169, 1
        %s323 = smul.addr %s322, 4
        %s324 = scalar_lea.vmem [#allocation11], %s323
        %s325 = smul.u32 2, %s29
        %s326 = smul.u32 2, %s29
        %s327 = smul.u32 32, %s29
        %p328 = scmp.eq.s32.totalorder %s29, 0
        // Predicated region
        $region57: #{tpu_custom_call.1} parent=39 // pred_check
          %p329 = pneg %p328
        $region58: #{tpu_custom_call.1} parent=39 // pred_check_branch
          %331 = sbr.rel (%p329) target = $region60
        $region59: #{tpu_custom_call.1} parent=39 // pred_region
          %332 = vst [vmem:[#allocation2] sm:$0xff] 0.0
        $region60: #{tpu_custom_call.1} parent=39 // pred_fallthru
          _
        %v333 = vld [vmem:[%s282] sm:$0xf]
        %v334 = vld [vmem:[#allocation6] sm:$0xff]
        %v335 = vld [vmem:[#allocation6 + $0x8] sm:$0xff]
        %v336 = vld [vmem:[#allocation6 + $0x10] sm:$0xff]
        %v337 = vld [vmem:[#allocation6 + $0x18] sm:$0xff]
        %v338 = vld [vmem:[#allocation6 + $0x20] sm:$0xff]
        %v339 = vld [vmem:[#allocation6 + $0x28] sm:$0xff]
        %v340 = vld [vmem:[#allocation6 + $0x30] sm:$0xff]
        %v341 = vld [vmem:[#allocation6 + $0x38] sm:$0xff]
        %v342 = vld [vmem:[#allocation6 + $0x40] sm:$0xff]
        %v343 = vld [vmem:[#allocation6 + $0x48] sm:$0xff]
        %v344 = vld [vmem:[#allocation6 + $0x50] sm:$0xff]
        %v345 = vld [vmem:[#allocation6 + $0x58] sm:$0xff]
        %v346 = vld [vmem:[#allocation6 + $0x60] sm:$0xff]
        %v347 = vld [vmem:[#allocation6 + $0x68] sm:$0xff]
        %v348 = vld [vmem:[#allocation6 + $0x70] sm:$0xff]
        %v349 = vld [vmem:[#allocation6 + $0x78] sm:$0xff]
        %v350 = vld [vmem:[#allocation8] sm:$0x3]
        %v352 = vperm.slane %v350, 0
        %v353 = vperm.slane %v350, 1
        %v372 = vunpack.c.l.b16 %v334
        %v373 = vunpack.c.h.b16 %v334
        %v374 = vunpack.c.l.b16 %v335
        %v375 = vunpack.c.h.b16 %v335
        %v376 = vunpack.c.l.b16 %v336
        %v377 = vunpack.c.h.b16 %v336
        %v378 = vunpack.c.l.b16 %v337
        %v379 = vunpack.c.h.b16 %v337
        %v380 = vunpack.c.l.b16 %v338
        %v381 = vunpack.c.h.b16 %v338
        %v382 = vunpack.c.l.b16 %v339
        %v383 = vunpack.c.h.b16 %v339
        %v384 = vunpack.c.l.b16 %v340
        %v385 = vunpack.c.h.b16 %v340
        %v386 = vunpack.c.l.b16 %v341
        %v387 = vunpack.c.h.b16 %v341
        %v388 = vunpack.c.l.b16 %v342
        %v389 = vunpack.c.h.b16 %v342
        %v390 = vunpack.c.l.b16 %v343
        %v391 = vunpack.c.h.b16 %v343
        %v392 = vunpack.c.l.b16 %v344
        %v393 = vunpack.c.h.b16 %v344
        %v394 = vunpack.c.l.b16 %v345
        %v395 = vunpack.c.h.b16 %v345
        %v396 = vunpack.c.l.b16 %v346
        %v397 = vunpack.c.h.b16 %v346
        %v398 = vunpack.c.l.b16 %v347
        %v399 = vunpack.c.h.b16 %v347
        %v400 = vunpack.c.l.b16 %v348
        %v401 = vunpack.c.h.b16 %v348
        %v402 = vunpack.c.l.b16 %v349
        %v403 = vunpack.c.h.b16 %v349
        %v404 = vpack.c.b16 %v374, %v372
        %v405 = vpack.c.b16 %v375, %v373
        %v406 = vpack.c.b16 %v378, %v376
        %v407 = vpack.c.b16 %v379, %v377
        %v408 = vpack.c.b16 %v382, %v380
        %v409 = vpack.c.b16 %v383, %v381
        %v410 = vpack.c.b16 %v386, %v384
        %v411 = vpack.c.b16 %v387, %v385
        %v412 = vpack.c.b16 %v390, %v388
        %v413 = vpack.c.b16 %v391, %v389
        %v414 = vpack.c.b16 %v394, %v392
        %v415 = vpack.c.b16 %v395, %v393
        %v416 = vpack.c.b16 %v398, %v396
        %v417 = vpack.c.b16 %v399, %v397
        %v418 = vpack.c.b16 %v402, %v400
        %v419 = vpack.c.b16 %v403, %v401
        %436 = vmatpush.bf16.msra.mxu0 %v418
        %437 = vmatpush.bf16.msra.mxu0 %v416
        %438 = vmatpush.bf16.msra.mxu0 %v414
        %439 = vmatpush.bf16.msra.mxu0 %v412
        %440 = vmatpush.bf16.msra.mxu0 %v410
        %441 = vmatpush.bf16.msra.mxu0 %v408
        %442 = vmatpush.bf16.msra.mxu0 %v406
        %443 = vmatpush.bf16.msra.mxu0 %v404
        %444 = vmatmul.bf16.gmra.mxu0 %v333
        %v445 = vpop.f32.mrf.mxu0
        %v446 = vadd.f32 %v352, %v445
        %v447 = vpop.f32.mrf.mxu0
        %448 = vdwg.mxu0
        %449 = vmatpush.bf16.msra.mxu0 %v419
        %450 = vmatpush.bf16.msra.mxu0 %v417
        %451 = vmatpush.bf16.msra.mxu0 %v415
        %452 = vmatpush.bf16.msra.mxu0 %v413
        %453 = vmatpush.bf16.msra.mxu0 %v411
        %454 = vmatpush.bf16.msra.mxu0 %v409
        %455 = vmatpush.bf16.msra.mxu0 %v407
        %456 = vmatpush.bf16.msra.mxu0 %v405
        %457 = vmatmul.bf16.gmra.mxu0 %v333
        %v458 = vpop.f32.mrf.mxu0
        %v459 = vadd.f32 %v353, %v458
        %v460 = vpop.f32.mrf.mxu0
        %461 = vdwg.mxu0
        %v462 = vmul.f32 %v446, 0.70710677
        %v463 = vmul.f32 %v459, 0.70710677
        %v464 = vmul.f32 %v462, %v462
        %v465 = vmin.f32 16.0, %v464
        %v466 = vmul.f32 %v465, 2.1237322e-06
        %v467 = vadd.f32 %v466, 0.00028619796
        %v468 = vmul.f32 %v465, %v467
        %v469 = vadd.f32 %v468, 0.0036580483
        %v470 = vmul.f32 %v465, %v469
        %v471 = vadd.f32 %v470, 0.05243302
        %v472 = vmul.f32 %v465, %v471
        %v473 = vadd.f32 %v472, 0.18741608
        %v474 = vmul.f32 %v465, %v473
        %v475 = vadd.f32 %v474, 1.1283791
        %v476 = vmul.f32 %v462, %v475
        %v477 = vmul.f32 %v465, 3.8918573e-05
        %v478 = vadd.f32 %v477, 0.001143296
        %v479 = vmul.f32 %v465, %v478
        %v480 = vadd.f32 %v479, 0.014752088
        %v481 = vmul.f32 %v465, %v480
        %v482 = vadd.f32 %v481, 0.112945676
        %v483 = vmul.f32 %v465, %v482
        %v484 = vadd.f32 %v483, 0.4994258
        %v485 = vmul.f32 %v465, %v484
        %v486 = vadd.f32 %v485, 1.0
        %v487 = vrcp.pop %v486
        %v488 = vmul.f32 %v486, %v487
        %v489 = vsub.f32 1.0, %v488
        %v490 = vmul.f32 %v487, %v489
        %v491 = vadd.f32 %v487, %v490
        %vm492 = vweird.f32 %v486
        %vm493 = vweird.f32 %v487
        %vm494 = vmor %vm492, %vm493
        %v495 = vsel %vm494, %v487, %v491
        %v496 = vand.u32 2147483647, %v486
        %vm497 = vcmp.eq.f32.partialorder %v496, 8.507059e+37
        %v498 = vand.u32 %v486, 2147483648
        %v499 = vor.u32 1.1754944e-38, %v498
        %v500 = vsel %vm497, %v499, %v495
        %v501 = vmul.f32 %v476, %v500
        %v502 = vmin.f32 %v501, 1.0
        %v503 = vmax.f32 %v502, -1.0
        %v504 = vmul.f32 %v463, %v463
        %v505 = vmin.f32 16.0, %v504
        %v506 = vmul.f32 %v505, 2.1237322e-06
        %v507 = vadd.f32 %v506, 0.00028619796
        %v508 = vmul.f32 %v505, %v507
        %v509 = vadd.f32 %v508, 0.0036580483
        %v510 = vmul.f32 %v505, %v509
        %v511 = vadd.f32 %v510, 0.05243302
        %v512 = vmul.f32 %v505, %v511
        %v513 = vadd.f32 %v512, 0.18741608
        %v514 = vmul.f32 %v505, %v513
        %v515 = vadd.f32 %v514, 1.1283791
        %v516 = vmul.f32 %v463, %v515
        %v517 = vmul.f32 %v505, 3.8918573e-05
        %v518 = vadd.f32 %v517, 0.001143296
        %v519 = vmul.f32 %v505, %v518
        %v520 = vadd.f32 %v519, 0.014752088
        %v521 = vmul.f32 %v505, %v520
        %v522 = vadd.f32 %v521, 0.112945676
        %v523 = vmul.f32 %v505, %v522
        %v524 = vadd.f32 %v523, 0.4994258
        %v525 = vmul.f32 %v505, %v524
        %v526 = vadd.f32 %v525, 1.0
        %v527 = vrcp.pop %v526
        %v528 = vmul.f32 %v526, %v527
        %v529 = vsub.f32 1.0, %v528
        %v530 = vmul.f32 %v527, %v529
        %v531 = vadd.f32 %v527, %v530
        %vm532 = vweird.f32 %v526
        %vm533 = vweird.f32 %v527
        %vm534 = vmor %vm532, %vm533
        %v535 = vsel %vm534, %v527, %v531
        %v536 = vand.u32 2147483647, %v526
        %vm537 = vcmp.eq.f32.partialorder %v536, 8.507059e+37
        %v538 = vand.u32 %v526, 2147483648
        %v539 = vor.u32 1.1754944e-38, %v538
        %v540 = vsel %vm537, %v539, %v535
        %v541 = vmul.f32 %v516, %v540
        %v542 = vmin.f32 %v541, 1.0
        %v543 = vmax.f32 %v542, -1.0
        %v544 = vadd.f32 %v503, 1.0
        %v545 = vadd.f32 %v543, 1.0
        %v546 = vmul.f32 %v544, 0.5
        %v547 = vmul.f32 %v545, 0.5
        %v548 = vmul.f32 %v446, %v546
        %v549 = vmul.f32 %v459, %v547
        %v550 = vld [vmem:[#allocation2] sm:$0xff]
        %v551 = vpack.c.bf16 %v548, %v548
        %v552 = vpack.c.bf16 %v549, %v549
        %v553 = vld [vmem:[#allocation9] sm:$0xf]
        %v554 = vld [vmem:[#allocation9 + $0x4] sm:$0xf]
        %v555 = vld [vmem:[#allocation9 + $0x8] sm:$0xf]
        %v556 = vld [vmem:[#allocation9 + $0xc] sm:$0xf]
        %v557 = vld [vmem:[#allocation9 + $0x10] sm:$0xf]
        %v558 = vld [vmem:[#allocation9 + $0x14] sm:$0xf]
        %v559 = vld [vmem:[#allocation9 + $0x18] sm:$0xf]
        %v560 = vld [vmem:[#allocation9 + $0x1c] sm:$0xf]
        %v561 = vld [vmem:[#allocation9 + $0x20] sm:$0xf]
        %v562 = vld [vmem:[#allocation9 + $0x24] sm:$0xf]
        %v563 = vld [vmem:[#allocation9 + $0x28] sm:$0xf]
        %v564 = vld [vmem:[#allocation9 + $0x2c] sm:$0xf]
        %v565 = vld [vmem:[#allocation9 + $0x30] sm:$0xf]
        %v566 = vld [vmem:[#allocation9 + $0x34] sm:$0xf]
        %v567 = vld [vmem:[#allocation9 + $0x38] sm:$0xf]
        %v568 = vld [vmem:[#allocation9 + $0x3c] sm:$0xf]
        %v569 = vld [vmem:[#allocation9 + $0x40] sm:$0xf]
        %v570 = vld [vmem:[#allocation9 + $0x44] sm:$0xf]
        %v571 = vld [vmem:[#allocation9 + $0x48] sm:$0xf]
        %v572 = vld [vmem:[#allocation9 + $0x4c] sm:$0xf]
        %v573 = vld [vmem:[#allocation9 + $0x50] sm:$0xf]
        %v574 = vld [vmem:[#allocation9 + $0x54] sm:$0xf]
        %v575 = vld [vmem:[#allocation9 + $0x58] sm:$0xf]
        %v576 = vld [vmem:[#allocation9 + $0x5c] sm:$0xf]
        %v577 = vld [vmem:[#allocation9 + $0x60] sm:$0xf]
        %v578 = vld [vmem:[#allocation9 + $0x64] sm:$0xf]
        %v579 = vld [vmem:[#allocation9 + $0x68] sm:$0xf]
        %v580 = vld [vmem:[#allocation9 + $0x6c] sm:$0xf]
        %v581 = vld [vmem:[#allocation9 + $0x70] sm:$0xf]
        %v582 = vld [vmem:[#allocation9 + $0x74] sm:$0xf]
        %v583 = vld [vmem:[#allocation9 + $0x78] sm:$0xf]
        %v584 = vld [vmem:[#allocation9 + $0x7c] sm:$0xf]
        %v617 = vunpack.c.l.b16 %v553
        %v618 = vunpack.c.l.b16 %v554
        %v619 = vunpack.c.l.b16 %v555
        %v620 = vunpack.c.l.b16 %v556
        %v621 = vunpack.c.l.b16 %v557
        %v622 = vunpack.c.l.b16 %v558
        %v623 = vunpack.c.l.b16 %v559
        %v624 = vunpack.c.l.b16 %v560
        %v625 = vunpack.c.l.b16 %v561
        %v626 = vunpack.c.l.b16 %v562
        %v627 = vunpack.c.l.b16 %v563
        %v628 = vunpack.c.l.b16 %v564
        %v629 = vunpack.c.l.b16 %v565
        %v630 = vunpack.c.l.b16 %v566
        %v631 = vunpack.c.l.b16 %v567
        %v632 = vunpack.c.l.b16 %v568
        %v633 = vunpack.c.l.b16 %v569
        %v634 = vunpack.c.l.b16 %v570
        %v635 = vunpack.c.l.b16 %v571
        %v636 = vunpack.c.l.b16 %v572
        %v637 = vunpack.c.l.b16 %v573
        %v638 = vunpack.c.l.b16 %v574
        %v639 = vunpack.c.l.b16 %v575
        %v640 = vunpack.c.l.b16 %v576
        %v641 = vunpack.c.l.b16 %v577
        %v642 = vunpack.c.l.b16 %v578
        %v643 = vunpack.c.l.b16 %v579
        %v644 = vunpack.c.l.b16 %v580
        %v645 = vunpack.c.l.b16 %v581
        %v646 = vunpack.c.l.b16 %v582
        %v647 = vunpack.c.l.b16 %v583
        %v648 = vunpack.c.l.b16 %v584
        %v649 = vpack.c.b16 %v618, %v617
        %v650 = vpack.c.b16 %v620, %v619
        %v651 = vpack.c.b16 %v622, %v621
        %v652 = vpack.c.b16 %v624, %v623
        %v653 = vpack.c.b16 %v626, %v625
        %v654 = vpack.c.b16 %v628, %v627
        %v655 = vpack.c.b16 %v630, %v629
        %v656 = vpack.c.b16 %v632, %v631
        %v657 = vpack.c.b16 %v634, %v633
        %v658 = vpack.c.b16 %v636, %v635
        %v659 = vpack.c.b16 %v638, %v637
        %v660 = vpack.c.b16 %v640, %v639
        %v661 = vpack.c.b16 %v642, %v641
        %v662 = vpack.c.b16 %v644, %v643
        %v663 = vpack.c.b16 %v646, %v645
        %v664 = vpack.c.b16 %v648, %v647
        %681 = vmatpush.bf16.msra.mxu0 %v656
        %682 = vmatpush.bf16.msra.mxu0 %v655
        %683 = vmatpush.bf16.msra.mxu0 %v654
        %684 = vmatpush.bf16.msra.mxu0 %v653
        %685 = vmatpush.bf16.msra.mxu0 %v652
        %686 = vmatpush.bf16.msra.mxu0 %v651
        %687 = vmatpush.bf16.msra.mxu0 %v650
        %688 = vmatpush.bf16.msra.mxu0 %v649
        %689 = vmatmul.bf16.gmra.mxu0 %v551
        %v690 = vpop.f32.mrf.mxu0
        %v691 = vadd.f32 0.0, %v690
        %v692 = vpop.f32.mrf.mxu0
        %693 = vdwg.mxu0
        %694 = vmatpush.bf16.msra.mxu0 %v664
        %695 = vmatpush.bf16.msra.mxu0 %v663
        %696 = vmatpush.bf16.msra.mxu0 %v662
        %697 = vmatpush.bf16.msra.mxu0 %v661
        %698 = vmatpush.bf16.msra.mxu0 %v660
        %699 = vmatpush.bf16.msra.mxu0 %v659
        %700 = vmatpush.bf16.msra.mxu0 %v658
        %701 = vmatpush.bf16.msra.mxu0 %v657
        %702 = vmatmul.bf16.gmra.mxu0 %v552
        %v703 = vpop.f32.mrf.mxu0
        %v704 = vadd.f32 %v691, %v703
        %v705 = vpop.f32.mrf.mxu0
        %706 = vdwg.mxu0
        %v707 = vadd.f32 %v550, %v704
        %708 = vst [vmem:[#allocation2] sm:$0xff] %v707
        // Predicated region
        $region61: #{tpu_custom_call.1} parent=39 // pred_check
          %p709 = pneg %p328
        $region62: #{tpu_custom_call.1} parent=39 // pred_check_branch
          %711 = sbr.rel (%p709) target = $region64
        $region63: #{tpu_custom_call.1} parent=39 // pred_region
          %v712 = vld [vmem:[#allocation2] sm:$0xff]
          %v713 = vld [vmem:[%s4] sm:$0x1]
          %v715 = vperm.slane %v713, 0
          %v717 = vadd.f32 %v712, %v715
          %v718 = vpack.c.bf16 %v717, %v717
          %719 = vst [vmem:[%s324] sm:$0xf] %v718
        $region64: #{tpu_custom_call.1} parent=39 // pred_fallthru
          _
        %s720 = sand.u32 %s169, 1
        %s721 = scalar_lea.sflag [#allocation5], %s720
        %s722 = sand.u32 %s169, 1
        %s723 = smul.addr %s722, 4
        %s724 = scalar_lea.vmem [#allocation11], %s723
        // Predicated region
        $region65: #{tpu_custom_call.1} parent=39 // pred_check
          %p725 = pneg %p179
        $region66: #{tpu_custom_call.1} parent=39 // pred_check_branch
          %727 = sbr.rel (%p725) target = $region68
        $region67: #{tpu_custom_call.1} parent=39 // pred_region
          %729 = vsyncadd %s721, 0
          %s730 = smul.addr %s28, 4
          %s731 = scalar_lea.hbm %s5, %s730
          %s733 = sshll.u32 %s724, 4
          %s734 = int_to_ptr.vmem [resolvable:$true] %s733
          %s735 = sshll.u32 %s731, 4
          %s736 = int_to_ptr.hbm [resolvable:$true] %s735
          %738 = dma.vmem_to_hbm [thread:$0]  %s734, 64, %s736, %s721
        $region68: #{tpu_custom_call.1} parent=39 // pred_fallthru
          _
      $region40: #{tpu_custom_call.1} parent=5 // pred_fallthru
        _
      %p739 = scmp.le.s32.totalorder 2, %s19
      // Predicated region
      $region69: #{tpu_custom_call.1} parent=5 // pred_check
        %p740 = pneg %p739
      $region70: #{tpu_custom_call.1} parent=5 // pred_check_branch
        %742 = sbr.rel (%p740) target = $region72
      $region71: #{tpu_custom_call.1} parent=5 // pred_region
        %s743 = ssub.s32 %s19, 2
        // Predicated region
        $region73: #{tpu_custom_call.1} parent=71 // pred_check
          %p744 = pneg %p185
        $region74: #{tpu_custom_call.1} parent=71 // pred_check_branch
          %746 = sbr.rel (%p744) target = $region76
        $region75: #{tpu_custom_call.1} parent=71 // pred_region
          %s747 = sand.u32 %s170, 1
          %s748 = scalar_lea.sflag [#allocation5], %s747
          %s749 = sand.u32 %s170, 1
          %s750 = smul.addr %s749, 4
          %s751 = scalar_lea.vmem [#allocation11], %s750
          %753 = dma.done %s748, 64
        $region76: #{tpu_custom_call.1} parent=71 // pred_fallthru
          _
      $region72: #{tpu_custom_call.1} parent=5 // pred_fallthru
        _
    $region6: #{tpu_custom_call.1} parent=1 // loop_footer
      %s23 = sadd.s32 1, %s19
    $region7: #{tpu_custom_call.1} parent=1 // loop_footer_branch
      %18 = sbr.rel target = $region3
    $region8: #{tpu_custom_call.1} parent=1 // loop_exit
      _
    %754 = vsyncpa [#allocation4], 1
    %s755 = scalar_lea.sflag [#allocation4], 1
    %756 = vsyncpa %s755, 1
    %757 = vsyncpa [#allocation7], 1
    %758 = vsyncpa [#allocation10], 1
    %759 = vsyncpa [#allocation5], 1
    %s760 = scalar_lea.sflag [#allocation5], 1
    %761 = vsyncpa %s760, 1

</llo_original>
